<compile_context>
chip_gen: v6e
topology: v6e:2x2x1
jax: 0.10.0
libtpu: 0.0.40
codegen_flags: <defaults>
</compile_context>

<pallas_src>
import functools

import jax
import jax.numpy as jnp
from jax import lax
from jax.experimental import pallas as pl
from jax.experimental.pallas import tpu as pltpu


def _round_up(x, m):
    return (x + m - 1) // m * m


def _pad_axis(arr, axis, target):
    """Zero-pad `axis` of `arr` up to `target`; no-op (no HBM copy) if aligned."""
    cur = arr.shape[axis]
    if cur == target:
        return arr
    pad = [(0, 0)] * arr.ndim
    pad[axis] = (0, target - cur)
    return jnp.pad(arr, pad)


def _chip_info():
    """(generation string, VMEM capacity bytes) with safe fallbacks."""
    kind = ""
    try:
        kind = jax.devices()[0].device_kind.lower()
    except Exception:
        pass
    if "v7" in kind:
        gen = "v7x"
    elif "v6" in kind:
        gen = "v6e"
    elif "v5e" in kind or "v5 lite" in kind or "v5litepod" in kind:
        gen = "v5e"
    else:
        gen = "other"
    vmem_cap = None
    try:
        vmem_cap = getattr(pltpu.get_tpu_info(), "vmem_capacity_bytes", None)
    except Exception:
        vmem_cap = None
    if not vmem_cap:
        vmem_cap = (64 << 20) if gen == "v7x" else (128 << 20)
    return gen, int(vmem_cap)


# ---------------------------------------------------------------------------
# Kernel (shared by both paths)
# ---------------------------------------------------------------------------

def _linear_xwt_kernel(x_ref, w_ref, b_ref, o_ref):
    """One Linear head tile: o = x @ W^T + b.

    x_ref: (TN, D) bf16/f32       (activations, PyTorch row layout)
    w_ref: (TC, D) bf16/f32       (PyTorch nn.Linear weight layout, NOT transposed)
    b_ref: (1, TC) f32
    o_ref: (TN, TC) out_dtype
    """
    logits = lax.dot_general(
        x_ref[...], w_ref[...],
        dimension_numbers=(((1,), (1,)), ((), ())),   # contract D of both -> x @ W^T
        preferred_element_type=jnp.float32)
    o_ref[...] = (logits + b_ref[...]).astype(o_ref.dtype)


# ---------------------------------------------------------------------------
# Wrapper
# ---------------------------------------------------------------------------

def pgfa_classifier_forward(feat_stack, weight_stack, bias_stack, *,
                            use_bf16=True, out_dtype=jnp.float32,
                            force_path=None):
    """feat_stack: (P, N, D), weight_stack: (P, C, D) (PyTorch Linear layout),
    bias_stack: (P, C).  Returns logits (P, N, C) in `out_dtype`.

    use_bf16=False gives bit-for-bit-style parity with an f32 PyTorch module
    (within accumulation-order noise); bf16 halves input/weight DMA.
    """
    P, N, D = feat_stack.shape
    Pw, C, Dw = weight_stack.shape
    assert (Pw, Dw) == (P, D)
    assert bias_stack.shape == (P, C)

    gen, vmem_cap = _chip_info()
    in_dtype = jnp.bfloat16 if use_bf16 else jnp.float32
    in_bytes = jnp.dtype(in_dtype).itemsize
    out_bytes = jnp.dtype(out_dtype).itemsize

    # Raise the scoped-VMEM limit explicitly, sized against the actual chip
    # (v7x only has 64 MiB physical per TensorCore).
    vmem_limit = int(min(vmem_cap // 2, 64 << 20))

    # Boundary casts only -- no padded / transposed HBM copies here.
    x = feat_stack.astype(in_dtype)                       # (P, N, D)
    w = weight_stack.astype(in_dtype)                     # (P, C, D)  (no transpose)
    b = bias_stack.astype(jnp.float32)[:, None, :]        # (P, 1, C)  f32 bias
    # TODO(synk): optional fp8(e4m3) weight quantization + per-head scale for
    # the v7x path (its MXU takes fp8 natively, no int8) to halve weight DMA again.

    # ---- path selection (per-generation single-shot gate) -----------------
    # Per-head working set of the grid=(P,) path, double-buffered by Pallas.
    head_ws = 2 * (N * D + C * D) * in_bytes + 2 * C * 4 + 2 * N * C * out_bytes
    fused_gate = {"v5e": 12 << 20, "v6e": 24 << 20, "v7x": 12 << 20}.get(gen, 12 << 20)
    small = head_ws <= fused_gate
    if force_path == "fused":
        small = True
    elif force_path == "tiled":
        small = False

    if small:
        # One grid step per head, full (unpadded) per-head blocks.  Full-extent
        # block dims are exempt from the (8,128) rule, so nothing is padded and
        # nothing is sliced afterwards.  "parallel" on P -> heads shard across
        # v7x's two TensorCores.
        cost = pl.CostEstimate(
            flops=2 * P * N * C * D,
            transcendentals=0,
            bytes_accessed=int((P * N * D + P * C * D) * in_bytes
                               + P * C * 4 + P * N * C * out_bytes))
        return pl.pallas_call(
            _linear_xwt_kernel,
            out_shape=jax.ShapeDtypeStruct((P, N, C), out_dtype),
            grid_spec=pltpu.PrefetchScalarGridSpec(
                num_scalar_prefetch=0,
                grid=(P,),
                in_specs=[
                    # Leading None == pl.Squeezed(): the size-1 P dim is
                    # squeezed out of the kernel refs.
                    pl.BlockSpec((None, N, D), lambda p: (p, 0, 0)),
                    pl.BlockSpec((None, C, D), lambda p: (p, 0, 0)),
                    pl.BlockSpec((None, 1, C), lambda p: (p, 0, 0)),
                ],
                out_specs=pl.BlockSpec((None, N, C), lambda p: (p, 0, 0)),
            ),
            compiler_params=pltpu.CompilerParams(
                dimension_semantics=("parallel",),
                vmem_limit_bytes=vmem_limit),
            cost_estimate=cost,
        )(x, w, b)

    # ---- tiled path --------------------------------------------------------
    Np8 = _round_up(N, 8)        # sublane multiple for the N (row) tile
    Cp128 = _round_up(C, 128)    # lane-dense output columns (unmasked vst)

    # tn: minimize N-pad waste over MXU-friendly candidates; tie-break larger
    # to amortize the ~0.35us/step grid overhead.  Small batches use Np8
    # directly (multiple of 8 is enough for a second-to-last block dim).
    if Np8 <= 128:
        tn = Np8
    else:
        tn = min((128, 256, 512), key=lambda c: (_round_up(Np8, c), -c))
    # tc: whole (128-rounded) C per step when it fits the per-generation cap.
    tc_cap = 512 if gen == "v7x" else 1024
    tc = min(Cp128, tc_cap)

    # Shrink tiles if the double-buffered working set overflows the VMEM budget.
    def _step_vmem(tn_, tc_):
        return (2 * tn_ * D * in_bytes + 2 * tc_ * D * in_bytes
                + 2 * tc_ * 4 + 2 * tn_ * tc_ * out_bytes)
    budget = int(0.7 * vmem_limit)
    while _step_vmem(tn, tc) > budget and tc > 128:
        tc = max(128, (tc // 2) // 128 * 128)
    while _step_vmem(tn, tc) > budget and tn > 128:
        tn = max(128, (tn // 2) // 128 * 128)
    # TODO(synk): add a D-reduction grid axis + f32 VMEM accumulator if em_dim
    # grows past a few thousand (keeps per-step VMEM bounded, esp. on v7x).

    Np = _round_up(Np8, tn)
    Cp = _round_up(Cp128, tc)

    # Pad only the dims that actually need it (no-ops when aligned).  D (the
    # contraction dim) is never padded: it rides as a full-extent block dim.
    x_t = _pad_axis(x, 1, Np)
    w_t = _pad_axis(w, 1, Cp)   # zero weight rows -> padded logit cols == 0
    b_t = _pad_axis(b, 2, Cp)

    # Grid order: N innermost, so the (tc, D) weight tile's block index is
    # constant across the innermost axis -> weights fetched ONCE per (head, j)
    # and reused across all N tiles; only the (smaller) x tile streams.
    grid = (P, Cp // tc, Np // tn)
    cost = pl.CostEstimate(
        flops=2 * P * Np * Cp * D,
        transcendentals=0,
        bytes_accessed=int((Cp // tc) * P * Np * D * in_bytes    # x re-streamed per C tile
                           + P * Cp * D * in_bytes               # weights once
                           + P * Cp * 4
                           + P * Np * Cp * out_bytes))
    out = pl.pallas_call(
        _linear_xwt_kernel,
        out_shape=jax.ShapeDtypeStruct((P, Np, Cp), out_dtype),
        grid_spec=pltpu.PrefetchScalarGridSpec(
            num_scalar_prefetch=0,
            grid=grid,
            in_specs=[
                # TODO(synk): sweep pipeline_mode=pl.Buffered(3) on the x spec
                # (the only operand whose block index changes every inner step).
                pl.BlockSpec((None, tn, D), lambda p, j, i: (p, i, 0)),
                pl.BlockSpec((None, tc, D), lambda p, j, i: (p, j, 0)),
                pl.BlockSpec((None, 1, tc), lambda p, j, i: (p, 0, j)),
            ],
            out_specs=pl.BlockSpec((None, tn, tc), lambda p, j, i: (p, i, j)),
        ),
        compiler_params=pltpu.CompilerParams(
            # Innermost axis "arbitrary" keeps the weight-residency traversal
            # strictly sequential; P and C tiles shard across cores on v7x.
            dimension_semantics=("parallel", "parallel", "arbitrary"),
            vmem_limit_bytes=vmem_limit),
        cost_estimate=cost,
    )(x_t, w_t, b_t)

    if (Np, Cp) != (N, C):
        out = out[:, :N, :C]
    return out


def init_classifier_params(key, num_heads, em_dim, num_classes):
    """Synthetic init matching weights_init_classifier: W ~ N(0, 0.001), b = 0."""
    weights = 0.001 * jax.random.normal(
        key, (num_heads, num_classes, em_dim), dtype=jnp.float32)
    biases = jnp.zeros((num_heads, num_classes), dtype=jnp.float32)
    return weights, biases


def _reference(feat, weight, bias):
    # Same bf16 input rounding the kernel applies (accumulation stays f32).
    x = feat.astype(jnp.bfloat16).astype(jnp.float32)
    w = weight.astype(jnp.bfloat16).astype(jnp.float32)
    return jnp.einsum("pnd,pcd->pnc", x, w) + bias[:, None, :]


if __name__ == "__main__":
    key = jax.random.PRNGKey(0)
    k1, k2, k3, k4 = jax.random.split(key, 4)

    # ---- Test 1: toy config (num_parts=3 -> 4 heads), takes the fused path --
    P1, N1, D1, C1 = 4, 4, 32, 16
    feat1 = jax.random.normal(k1, (P1, N1, D1), dtype=jnp.float32)
    w1, b1 = init_classifier_params(k2, P1, D1, C1)
    reduction_pool_feat_list = [feat1[i] for i in range(P1)]

    logits1 = pgfa_classifier_forward(
        jnp.stack(reduction_pool_feat_list, axis=0), w1, b1, use_bf16=True)
    logits1 = jax.block_until_ready(logits1)
    cls_feat_list = [logits1[i] for i in range(P1)]

    ref1 = _reference(feat1, w1, b1)
    assert logits1.shape == (P1, N1, C1)
    assert jnp.allclose(logits1, ref1, atol=1e-5, rtol=1e-3), "fused path mismatch"

    # 'test' flow of the module = head 0 only (same kernel, slice of the output).
    test_flow = cls_feat_list[:1]
    assert len(cls_feat_list) == P1 and test_flow[0].shape == (N1, C1)

    # ---- Test 2: small but forced onto the tiled path (ragged N/C, D!=128k) --
    P2, N2, D2, C2 = 3, 40, 96, 200
    feat2 = jax.random.normal(k3, (P2, N2, D2), dtype=jnp.float32)
    w2, b2 = init_classifier_params(k4, P2, D2, C2)

    logits2 = pgfa_classifier_forward(
        feat2, w2, b2, use_bf16=True, force_path="tiled")
    logits2 = jax.block_until_ready(logits2)
    ref2 = _reference(feat2, w2, b2)
    assert logits2.shape == (P2, N2, C2)
    assert jnp.allclose(logits2, ref2, atol=1e-5, rtol=1e-3), "tiled path mismatch"

    print("KERNEL_OK")
</pallas_src>

<mosaic_0001>
module attributes {stable_mosaic.version = 11 : i64} {
  func.func @_linear_xwt_kernel(%arg0: i32, %arg1: memref<1x4x32xbf16, #tpu.memory_space<vmem>>, %arg2: memref<1x16x32xbf16, #tpu.memory_space<vmem>>, %arg3: memref<1x1x16xf32, #tpu.memory_space<vmem>>, %arg4: memref<1x4x16xf32, #tpu.memory_space<vmem>>) attributes {dimension_semantics = [#tpu.dimension_semantics<parallel>], iteration_bounds = array<i64: 4>, scalar_prefetch = 0 : i64, scratch_operands = 0 : i64, tpu.core_type = #tpu.core_type<tc>, window_params = [{transform_indices = @transform_0, window_bounds = array<i64: 1, 4, 32>}, {transform_indices = @transform_1, window_bounds = array<i64: 1, 16, 32>}, {transform_indices = @transform_2, window_bounds = array<i64: 1, 1, 16>}, {transform_indices = @transform_3, window_bounds = array<i64: 1, 4, 16>}]} {
    %c0 = arith.constant 0 : index
    %c0_0 = arith.constant 0 : index
    %c0_1 = arith.constant 0 : index
    %0 = vector.load %arg1[%c0, %c0_0, %c0_1] : memref<1x4x32xbf16, #tpu.memory_space<vmem>>, vector<1x4x32xbf16>
    %1 = vector.shape_cast %0 : vector<1x4x32xbf16> to vector<4x32xbf16>
    %c0_2 = arith.constant 0 : index
    %c0_3 = arith.constant 0 : index
    %c0_4 = arith.constant 0 : index
    %2 = vector.load %arg2[%c0_2, %c0_3, %c0_4] : memref<1x16x32xbf16, #tpu.memory_space<vmem>>, vector<1x16x32xbf16>
    %3 = vector.shape_cast %2 : vector<1x16x32xbf16> to vector<16x32xbf16>
    %cst = arith.constant dense<0.000000e+00> : vector<4x16xf32>
    %4 = tpu.matmul %1, %3, %cst {dimension_numbers = #tpu.dot_dimension_numbers<[1], [1], [0], [0], [0, 0, 1, 0], [], []>} : vector<4x32xbf16>, vector<16x32xbf16>, vector<4x16xf32> -> vector<4x16xf32>
    %c0_5 = arith.constant 0 : index
    %c0_6 = arith.constant 0 : index
    %c0_7 = arith.constant 0 : index
    %5 = vector.load %arg3[%c0_5, %c0_6, %c0_7] : memref<1x1x16xf32, #tpu.memory_space<vmem>>, vector<1x1x16xf32>
    %6 = vector.shape_cast %5 : vector<1x1x16xf32> to vector<1x16xf32>
    %7 = vector.broadcast %6 : vector<1x16xf32> to vector<4x16xf32>
    %8 = arith.addf %4, %7 : vector<4x16xf32>
    %c0_8 = arith.constant 0 : index
    %c0_9 = arith.constant 0 : index
    %c0_10 = arith.constant 0 : index
    %9 = vector.load %arg4[%c0_8, %c0_9, %c0_10] : memref<1x4x16xf32, #tpu.memory_space<vmem>>, vector<1x4x16xf32>
    %10 = vector.shape_cast %9 : vector<1x4x16xf32> to vector<4x16xf32>
    %11 = vector.shape_cast %8 : vector<4x16xf32> to vector<1x4x16xf32>
    tpu.vector_store %arg4[%c0_8, %c0_9, %c0_10], %11 {strides = array<i32>} : memref<1x4x16xf32, #tpu.memory_space<vmem>>, vector<1x4x16xf32>,
    return
  }
  func.func @transform_0(%arg0: i32) -> (i32, i32, i32) {
    %c0_i32 = arith.constant 0 : i32
    %c0_i32_0 = arith.constant 0 : i32
    %c0_i32_1 = arith.constant 0 : i32
    return %arg0, %c0_i32, %c0_i32_0 : i32, i32, i32
  }
  func.func @transform_1(%arg0: i32) -> (i32, i32, i32) {
    %c0_i32 = arith.constant 0 : i32
    %c0_i32_0 = arith.constant 0 : i32
    %c0_i32_1 = arith.constant 0 : i32
    return %arg0, %c0_i32, %c0_i32_0 : i32, i32, i32
  }
  func.func @transform_2(%arg0: i32) -> (i32, i32, i32) {
    %c0_i32 = arith.constant 0 : i32
    %c0_i32_0 = arith.constant 0 : i32
    %c0_i32_1 = arith.constant 0 : i32
    return %arg0, %c0_i32, %c0_i32_0 : i32, i32, i32
  }
  func.func @transform_3(%arg0: i32) -> (i32, i32, i32) {
    %c0_i32 = arith.constant 0 : i32
    %c0_i32_0 = arith.constant 0 : i32
    %c0_i32_1 = arith.constant 0 : i32
    return %arg0, %c0_i32, %c0_i32_0 : i32, i32, i32
  }
}

</mosaic_0001>

<llo_original>
// kernel: tpu_custom_call.1
$region0: #{tpu_custom_call.1}
  #allocation0 [shape = 'u32[]', space=smem, size = 0x4, offset = 0x4, fixed_abs, tag = 'smem constant byte address 0x4 - core index']
  #allocation1 [shape = 'u32[144,128]{1,0:T(1,128)}', space=vmem, size = 0x12000, scoped, tag = 'internal scratch']
  %s0 = inlined_call_operand.hbm [shape: bf16[4,4,32], index: 0, kind: input, shape index: {}]
  %s1 = inlined_call_operand.hbm [shape: bf16[4,16,32], index: 1, kind: input, shape index: {}]
  %s2 = inlined_call_operand.hbm [shape: f32[4,1,16], index: 2, kind: input, shape index: {}]
  %s3 = inlined_call_operand.hbm [shape: f32[4,4,16], index: 3, kind: output, shape index: {}]
  %s4 = sld [smem:[#allocation0]]
  $region57: #{tpu_custom_call.1} parent=0
    _
  %s6 = ssub.s32 1, %s4
  %s7 = scalar_select 0, %s6, %s4
  $region1: #{tpu_custom_call.1} parent=0
    #allocation2 [shape = 'u8[2048]{0}', space=vmem, size = 0x800, scoped, tag = 'input window, operand 0']
    #allocation3 [shape = 's32[2]{0}', space=sflag, size = 0x8, scoped, tag = 'scoped memory for tpu_custom_call.1']
    #allocation4 [shape = 's32[2]{0}', space=sflag, size = 0x8, scoped, tag = 'scoped memory for tpu_custom_call.1']
    #allocation5 [shape = 'u8[8192]{0}', space=vmem, size = 0x2000, scoped, tag = 'input window, operand 1']
    #allocation6 [shape = 's32[2]{0}', space=sflag, size = 0x8, scoped, tag = 'scoped memory for tpu_custom_call.1']
    #allocation7 [shape = 'u8[1024]{0}', space=vmem, size = 0x400, scoped, tag = 'input window, operand 2']
    #allocation8 [shape = 'u8[4096]{0}', space=vmem, size = 0x1000, scoped, tag = 'output window, operand 0']
    %8 = vsyncpa [#allocation3], 0
    %s9 = scalar_lea.sflag [#allocation3], 1
    %10 = vsyncpa %s9, 0
    %11 = vsyncpa [#allocation6], 0
    %s12 = scalar_lea.sflag [#allocation6], 1
    %13 = vsyncpa %s12, 0
    %14 = vsyncpa [#allocation4], 0
    %s15 = scalar_lea.sflag [#allocation4], 1
    %16 = vsyncpa %s15, 0
    loop: start=0, step=1, limit=6
    $region2: #{tpu_custom_call.1} parent=1 // loop_pre_header
      _
    $region3: #{tpu_custom_call.1} parent=1 // loop_header
      %s18 = sphi 0, %s22
      %p19 = scmp.ge.s32.totalorder %s18, 6
      %s28 = sphi 0, %s30
      %s31 = sphi 0, %s28
      %s32 = sphi 0, %s31
      %s48 = sphi 0, %s32
      %s54 = sphi 0, %s56
      %s57 = sphi 0, %s54
      %s58 = sphi 0, %s57
      %s74 = sphi 0, %s58
      %s80 = sphi 0, %s82
      %s83 = sphi 0, %s80
      %s84 = sphi 0, %s83
      %s100 = sphi 0, %s84
      %s106 = sphi 0, %s108
      %s109 = sphi 0, %s106
      %s110 = sphi 0, %s109
      %s126 = sphi 0, %s110
    $region4: #{tpu_custom_call.1} parent=1 // loop_header_branch
      %21 = sbr.rel (%p19) target = $region8
    $region5: #{tpu_custom_call.1} parent=1 // loop_body
      %s23 = ssub.s32 %s18, 1
      %s24 = ssub.s32 %s18, 2
      %s25 = sadd.s32 %s18, 1
      %s26 = ssub.s32 %s18, %s25
      %p27 = scmp.eq.s32.totalorder %s26, 0
      %s29 = sadd.s32 %s28, 1
      %s30 = scalar_select %p27, %s28, %s29
      %p33 = pneg %p27
      %p34 = scmp.eq.s32.totalorder %s18, 3
      %p35 = por %p33, %p34
      %p36 = scmp.ne.s32.totalorder %s28, %s31
      %p37 = scmp.eq.s32.totalorder %s18, 0
      %p38 = por %p36, %p37
      %p39 = scmp.ne.s32.totalorder %s28, %s31
      %p40 = scmp.eq.s32.totalorder %s23, 3
      %p41 = por %p39, %p40
      %p42 = scmp.ne.s32.totalorder %s31, %s32
      %p43 = scmp.eq.s32.totalorder %s23, 0
      %p44 = por %p42, %p43
      %p45 = scmp.ne.s32.totalorder %s31, %s32
      %p46 = scmp.eq.s32.totalorder %s24, 3
      %p47 = por %p45, %p46
      %p49 = scmp.ne.s32.totalorder %s32, %s48
      %p50 = scmp.eq.s32.totalorder %s24, 0
      %p51 = por %p49, %p50
      %s52 = ssub.s32 %s18, %s25
      %p53 = scmp.eq.s32.totalorder %s52, 0
      %s55 = sadd.s32 %s54, 1
      %s56 = scalar_select %p53, %s54, %s55
      %p59 = pneg %p53
      %p60 = scmp.eq.s32.totalorder %s18, 3
      %p61 = por %p59, %p60
      %p62 = scmp.ne.s32.totalorder %s54, %s57
      %p63 = scmp.eq.s32.totalorder %s18, 0
      %p64 = por %p62, %p63
      %p65 = scmp.ne.s32.totalorder %s54, %s57
      %p66 = scmp.eq.s32.totalorder %s23, 3
      %p67 = por %p65, %p66
      %p68 = scmp.ne.s32.totalorder %s57, %s58
      %p69 = scmp.eq.s32.totalorder %s23, 0
      %p70 = por %p68, %p69
      %p71 = scmp.ne.s32.totalorder %s57, %s58
      %p72 = scmp.eq.s32.totalorder %s24, 3
      %p73 = por %p71, %p72
      %p75 = scmp.ne.s32.totalorder %s58, %s74
      %p76 = scmp.eq.s32.totalorder %s24, 0
      %p77 = por %p75, %p76
      %s78 = ssub.s32 %s18, %s25
      %p79 = scmp.eq.s32.totalorder %s78, 0
      %s81 = sadd.s32 %s80, 1
      %s82 = scalar_select %p79, %s80, %s81
      %p85 = pneg %p79
      %p86 = scmp.eq.s32.totalorder %s18, 3
      %p87 = por %p85, %p86
      %p88 = scmp.ne.s32.totalorder %s80, %s83
      %p89 = scmp.eq.s32.totalorder %s18, 0
      %p90 = por %p88, %p89
      %p91 = scmp.ne.s32.totalorder %s80, %s83
      %p92 = scmp.eq.s32.totalorder %s23, 3
      %p93 = por %p91, %p92
      %p94 = scmp.ne.s32.totalorder %s83, %s84
      %p95 = scmp.eq.s32.totalorder %s23, 0
      %p96 = por %p94, %p95
      %p97 = scmp.ne.s32.totalorder %s83, %s84
      %p98 = scmp.eq.s32.totalorder %s24, 3
      %p99 = por %p97, %p98
      %p101 = scmp.ne.s32.totalorder %s84, %s100
      %p102 = scmp.eq.s32.totalorder %s24, 0
      %p103 = por %p101, %p102
      %s104 = ssub.s32 %s18, %s25
      %p105 = scmp.eq.s32.totalorder %s104, 0
      %s107 = sadd.s32 %s106, 1
      %s108 = scalar_select %p105, %s106, %s107
      %p111 = pneg %p105
      %p112 = scmp.eq.s32.totalorder %s18, 3
      %p113 = por %p111, %p112
      %p114 = scmp.ne.s32.totalorder %s106, %s109
      %p115 = scmp.eq.s32.totalorder %s18, 0
      %p116 = por %p114, %p115
      %p117 = scmp.ne.s32.totalorder %s106, %s109
      %p118 = scmp.eq.s32.totalorder %s23, 3
      %p119 = por %p117, %p118
      %p120 = scmp.ne.s32.totalorder %s109, %s110
      %p121 = scmp.eq.s32.totalorder %s23, 0
      %p122 = por %p120, %p121
      %p123 = scmp.ne.s32.totalorder %s109, %s110
      %p124 = scmp.eq.s32.totalorder %s24, 3
      %p125 = por %p123, %p124
      %p127 = scmp.ne.s32.totalorder %s110, %s126
      %p128 = scmp.eq.s32.totalorder %s24, 0
      %p129 = por %p127, %p128
      %p130 = scmp.le.s32.totalorder 1, %s18
      %p131 = scmp.lt.s32.totalorder %s18, 5
      %p132 = pnand %p130, %p131
      %p133 = pneg %p132
      // Predicated region
      $region9: #{tpu_custom_call.1} parent=5 // pred_check
        _
      $region10: #{tpu_custom_call.1} parent=5 // pred_check_branch
        %135 = sbr.rel (%p132) target = $region12
      $region11: #{tpu_custom_call.1} parent=5 // pred_region
        %s136 = ssub.s32 %s18, 1
      $region12: #{tpu_custom_call.1} parent=5 // pred_fallthru
        _
      %p137 = scmp.lt.s32.totalorder %s18, 4
      // Predicated region
      $region13: #{tpu_custom_call.1} parent=5 // pred_check
        %p138 = pneg %p137
      $region14: #{tpu_custom_call.1} parent=5 // pred_check_branch
        %140 = sbr.rel (%p138) target = $region16
      $region15: #{tpu_custom_call.1} parent=5 // pred_region
        // Predicated region
        $region17: #{tpu_custom_call.1} parent=15 // pred_check
          %p141 = pneg %p38
        $region18: #{tpu_custom_call.1} parent=15 // pred_check_branch
          %143 = sbr.rel (%p141) target = $region20
        $region19: #{tpu_custom_call.1} parent=15 // pred_region
          %s144 = sand.u32 %s28, 1
          %s145 = scalar_lea.sflag [#allocation3], %s144
          %s146 = sand.u32 %s28, 1
          %s147 = smul.addr %s146, 2
          %s148 = scalar_lea.vmem [#allocation2], %s147
          %s150 = ssub.s32 32, 32
          %151 = vsyncadd %s145, %s150
          %s152 = smul.addr %s18, 32
          %s153 = scalar_lea.hbm %s0, %s152
          %s155 = sshll.u32 %s148, 4
          %s156 = int_to_ptr.vmem [resolvable:$true] %s155
          %158 = dma.hbm_to_vmem [thread:$0]  %s153, 32, %s156, %s145
        $region20: #{tpu_custom_call.1} parent=15 // pred_fallthru
          _
        // Predicated region
        $region21: #{tpu_custom_call.1} parent=15 // pred_check
          %p159 = pneg %p64
        $region22: #{tpu_custom_call.1} parent=15 // pred_check_branch
          %161 = sbr.rel (%p159) target = $region24
        $region23: #{tpu_custom_call.1} parent=15 // pred_region
          %s162 = sand.u32 %s18, 1
          %s163 = scalar_lea.sflag [#allocation6], %s162
          %s164 = sand.u32 %s54, 1
          %s165 = smul.addr %s164, 8
          %s166 = scalar_lea.vmem [#allocation5], %s165
          %s168 = ssub.s32 128, 128
          %169 = vsyncadd %s163, %s168
          %s170 = smul.addr %s18, 2
          %s171 = smul.addr %s170, 64
          %s172 = scalar_lea.hbm %s1, %s171
          %s173 = sshll.u32 %s166, 4
          %s174 = int_to_ptr.vmem [resolvable:$true] %s173
          %179 = dma.hbm_to_vmem [thread:$0]  %s172, 128, %s174, %s163, 64, 64, 4
        $region24: #{tpu_custom_call.1} parent=15 // pred_fallthru
          _
        // Predicated region
        $region25: #{tpu_custom_call.1} parent=15 // pred_check
          %p180 = pneg %p90
        $region26: #{tpu_custom_call.1} parent=15 // pred_check_branch
          %182 = sbr.rel (%p180) target = $region28
        $region27: #{tpu_custom_call.1} parent=15 // pred_region
          %s183 = sand.u32 %s18, 1
          %s184 = scalar_lea.sflag [#allocation6], %s183
          %s185 = sand.u32 %s80, 1
          %s186 = scalar_lea.vmem [#allocation7], %s185
          %s188 = ssub.s32 16, 16
          %189 = vsyncadd %s184, %s188
          %s190 = smul.addr %s18, 16
          %s191 = scalar_lea.hbm %s2, %s190
          %s193 = sshll.u32 %s186, 4
          %s194 = int_to_ptr.vmem [resolvable:$true] %s193
          %196 = dma.hbm_to_vmem [thread:$0]  %s191, 16, %s194, %s184
        $region28: #{tpu_custom_call.1} parent=15 // pred_fallthru
          _
      $region16: #{tpu_custom_call.1} parent=5 // pred_fallthru
        _
      %p197 = scmp.le.s32.totalorder 1, %s18
      %p198 = scmp.lt.s32.totalorder %s18, 5
      %p199 = pnand %p197, %p198
      %p200 = pneg %p199
      // Predicated region
      $region29: #{tpu_custom_call.1} parent=5 // pred_check
        _
      $region30: #{tpu_custom_call.1} parent=5 // pred_check_branch
        %202 = sbr.rel (%p199) target = $region32
      $region31: #{tpu_custom_call.1} parent=5 // pred_region
        %s203 = ssub.s32 %s18, 1
        %s204 = sand.u32 %s31, 1
        %s205 = scalar_lea.sflag [#allocation3], %s204
        %s206 = sand.u32 %s31, 1
        %s207 = smul.addr %s206, 2
        %s208 = scalar_lea.vmem [#allocation2], %s207
        // Predicated region
        $region33: #{tpu_custom_call.1} parent=31 // pred_check
          %p209 = pneg %p44
        $region34: #{tpu_custom_call.1} parent=31 // pred_check_branch
          %211 = sbr.rel (%p209) target = $region36
        $region35: #{tpu_custom_call.1} parent=31 // pred_region
          %212 = dma.done %s205, 32
        $region36: #{tpu_custom_call.1} parent=31 // pred_fallthru
          _
        %s213 = sand.u32 %s23, 1
        %s214 = scalar_lea.sflag [#allocation6], %s213
        %s215 = sand.u32 %s57, 1
        %s216 = smul.addr %s215, 8
        %s217 = scalar_lea.vmem [#allocation5], %s216
        // Predicated region
        $region37: #{tpu_custom_call.1} parent=31 // pred_check
          %p218 = pneg %p70
        $region38: #{tpu_custom_call.1} parent=31 // pred_check_branch
          %220 = sbr.rel (%p218) target = $region40
        $region39: #{tpu_custom_call.1} parent=31 // pred_region
          %221 = dma.done %s214, 128
        $region40: #{tpu_custom_call.1} parent=31 // pred_fallthru
          _
        %s222 = sand.u32 %s23, 1
        %s223 = scalar_lea.sflag [#allocation6], %s222
        %s224 = sand.u32 %s83, 1
        %s225 = scalar_lea.vmem [#allocation7], %s224
        // Predicated region
        $region41: #{tpu_custom_call.1} parent=31 // pred_check
          %p226 = pneg %p96
        $region42: #{tpu_custom_call.1} parent=31 // pred_check_branch
          %228 = sbr.rel (%p226) target = $region44
        $region43: #{tpu_custom_call.1} parent=31 // pred_region
          %229 = dma.done %s223, 16
        $region44: #{tpu_custom_call.1} parent=31 // pred_fallthru
          _
        %s230 = sand.u32 %s31, 1
        %s231 = scalar_lea.sflag [#allocation3], %s230
        %s232 = sand.u32 %s31, 1
        %s233 = smul.addr %s232, 2
        %s234 = scalar_lea.vmem [#allocation2], %s233
        %p235 = pneg %p44
        %p236 = pneg %p41
        %s237 = sand.u32 %s23, 1
        %s238 = scalar_lea.sflag [#allocation6], %s237
        %s239 = sand.u32 %s57, 1
        %s240 = smul.addr %s239, 8
        %s241 = scalar_lea.vmem [#allocation5], %s240
        %p242 = pneg %p70
        %p243 = pneg %p67
        %s244 = sand.u32 %s23, 1
        %s245 = scalar_lea.sflag [#allocation6], %s244
        %s246 = sand.u32 %s83, 1
        %s247 = scalar_lea.vmem [#allocation7], %s246
        %p248 = pneg %p96
        %p249 = pneg %p93
        %p250 = pneg %p122
        %p251 = pneg %p119
        %s252 = sand.u32 %s109, 1
        %s253 = scalar_lea.sflag [#allocation4], %s252
        %s254 = sand.u32 %s109, 1
        %s255 = smul.addr %s254, 4
        %s256 = scalar_lea.vmem [#allocation8], %s255
        %v258 = vld [vmem:[%s208] sm:$0x3]
        %v259 = vld [vmem:[%s217] sm:$0xf]
        %v260 = vld [vmem:[%s217 + $0x4] sm:$0xf]
        %v261 = vld [vmem:[%s225] sm:$0x1]
        %v263 = vlaneseq
        %v264 = vshrl.u32 %v263, 7
        %v265 = vsub.s32 0, %v264
        %v266 = vrot.slane %v261, %v265
        %v270 = vunpack.c.l.b16 %v259
        %v271 = vunpack.c.l.b16 %v260
        %v272 = vpack.c.b16 %v271, %v270
        %vm273 = vcmask 261120
        %v275 = vsel %vm273, %v258, 0
        %v278 = vsel %vm273, %v272, 0
        %280 = vmatprep.subr.bf16.mxu0 0
        %281 = vmatpush1.bf16.xpose.msra.mxu0 0
        %282 = vmatprep.subr.bf16.mxu0 0
        %283 = vmatpush1.bf16.xpose.msra.mxu0 0
        %284 = vmatprep.subr.bf16.mxu0 0
        %285 = vmatpush1.bf16.xpose.msra.mxu0 0
        %286 = vmatprep.subr.bf16.mxu0 0
        %287 = vmatpush1.bf16.xpose.msra.mxu0 0
        %288 = vmatprep.subr.bf16.mxu0 0
        %289 = vmatpush1.bf16.xpose.msra.mxu0 0
        %290 = vmatprep.subr.bf16.mxu0 0
        %291 = vmatpush1.bf16.xpose.msra.mxu0 0
        %292 = vmatprep.subr.bf16.mxu0 0
        %293 = vmatpush1.bf16.xpose.msra.mxu0 0
        %294 = vmatprep.subr.bf16.mxu0 0
        %295 = vmatpush1.bf16.xpose.msra.mxu0 %v278
        %296 = vmatprep.subr.bf16.mxu0 0
        %297 = vmatpush2.bf16.xpose.msra.mxu0 0
        %298 = vmatprep.subr.bf16.mxu0 0
        %299 = vmatpush2.bf16.xpose.msra.mxu0 0
        %300 = vmatprep.subr.bf16.mxu0 0
        %301 = vmatpush2.bf16.xpose.msra.mxu0 0
        %302 = vmatprep.subr.bf16.mxu0 0
        %303 = vmatpush2.bf16.xpose.msra.mxu0 0
        %304 = vmatprep.subr.bf16.mxu0 0
        %305 = vmatpush2.bf16.xpose.msra.mxu0 0
        %306 = vmatprep.subr.bf16.mxu0 0
        %307 = vmatpush2.bf16.xpose.msra.mxu0 0
        %308 = vmatprep.subr.bf16.mxu0 0
        %309 = vmatpush2.bf16.xpose.msra.mxu0 0
        %310 = vmatprep.subr.bf16.mxu0 0
        %311 = vmatpush2.bf16.xpose.msra.mxu0 0
        %312 = vmatprep.mubr.bf16.mxu0 0
        %313 = vmatmul.mubr.bf16.gmra.mxu0 %v275
        %v314 = vpop.f32.mrf.mxu0
        %v315 = vadd.f32 %v266, %v314
        %v316 = vpop.f32.mrf.mxu0
        %v317 = vpop.f32.mrf.mxu0
        %v318 = vpop.f32.mrf.mxu0
        %319 = vdwg.mxu0
        %vm320 = vcmask 125952
        %321 = vst.msk [vmem:[%s256] sm:$0xf] %vm320, %v315
        %s322 = sand.u32 %s109, 1
        %s323 = scalar_lea.sflag [#allocation4], %s322
        %s324 = sand.u32 %s109, 1
        %s325 = smul.addr %s324, 4
        %s326 = scalar_lea.vmem [#allocation8], %s325
        // Predicated region
        $region45: #{tpu_custom_call.1} parent=31 // pred_check
          %p327 = pneg %p119
        $region46: #{tpu_custom_call.1} parent=31 // pred_check_branch
          %329 = sbr.rel (%p327) target = $region48
        $region47: #{tpu_custom_call.1} parent=31 // pred_region
          %s331 = ssub.s32 64, 64
          %332 = vsyncadd %s323, %s331
          %s333 = smul.addr %s23, 64
          %s334 = scalar_lea.hbm %s3, %s333
          %s336 = sshll.u32 %s326, 4
          %s337 = int_to_ptr.vmem [resolvable:$true] %s336
          %339 = dma.vmem_to_hbm [thread:$0]  %s337, 64, %s334, %s323
        $region48: #{tpu_custom_call.1} parent=31 // pred_fallthru
          _
      $region32: #{tpu_custom_call.1} parent=5 // pred_fallthru
        _
      %p340 = scmp.le.s32.totalorder 2, %s18
      // Predicated region
      $region49: #{tpu_custom_call.1} parent=5 // pred_check
        %p341 = pneg %p340
      $region50: #{tpu_custom_call.1} parent=5 // pred_check_branch
        %343 = sbr.rel (%p341) target = $region52
      $region51: #{tpu_custom_call.1} parent=5 // pred_region
        %s344 = ssub.s32 %s18, 2
        // Predicated region
        $region53: #{tpu_custom_call.1} parent=51 // pred_check
          %p345 = pneg %p125
        $region54: #{tpu_custom_call.1} parent=51 // pred_check_branch
          %347 = sbr.rel (%p345) target = $region56
        $region55: #{tpu_custom_call.1} parent=51 // pred_region
          %s348 = sand.u32 %s110, 1
          %s349 = scalar_lea.sflag [#allocation4], %s348
          %s350 = sand.u32 %s110, 1
          %s351 = smul.addr %s350, 4
          %s352 = scalar_lea.vmem [#allocation8], %s351
          %353 = dma.done %s349, 64
        $region56: #{tpu_custom_call.1} parent=51 // pred_fallthru
          _
      $region52: #{tpu_custom_call.1} parent=5 // pred_fallthru
        _
    $region6: #{tpu_custom_call.1} parent=1 // loop_footer
      %s22 = sadd.s32 1, %s18
    $region7: #{tpu_custom_call.1} parent=1 // loop_footer_branch
      %17 = sbr.rel target = $region3
    $region8: #{tpu_custom_call.1} parent=1 // loop_exit
      _
    %354 = vsyncpa [#allocation3], 1
    %s355 = scalar_lea.sflag [#allocation3], 1
    %356 = vsyncpa %s355, 1
    %357 = vsyncpa [#allocation6], 1
    %s358 = scalar_lea.sflag [#allocation6], 1
    %359 = vsyncpa %s358, 1
    %360 = vsyncpa [#allocation4], 1
    %s361 = scalar_lea.sflag [#allocation4], 1
    %362 = vsyncpa %s361, 1

</llo_original>
